<compile_context>
chip_gen: v6e
topology: v6e:2x2x1
jax: 0.10.0
libtpu: 0.0.40
codegen_flags: <defaults>
</compile_context>

<pallas_src>
import functools

import jax
import jax.numpy as jnp
from jax.experimental import pallas as pl
from jax.experimental.pallas import tpu as pltpu


def _round_up(x, m):
    return (x + m - 1) // m * m


def prepare_ednn_params(w1, b1, w2, b2):
    """Pack PyTorch-layout (w1, b1, w2, b2) into ONE f32 parameter slab.

    Call once at parameter-init time (or let it constant-fold under jit with
    static params); it is not part of the per-forward hot path.

    Layout (rows = max(H, Dout), cols = Din + 1 + H + 1):
      [:H,    0:Din]             = w1  (H, Din)
      [:H,    Din:Din+1]         = b1  (H, 1)
      [:Dout, Din+1:Din+1+H]     = w2  (Dout, H)
      [:Dout, Din+1+H:Din+2+H]   = b2  (Dout, 1)
    """
    h, din = w1.shape
    dout = w2.shape[0]
    rows = max(h, dout)
    cols = din + 1 + h + 1
    slab = jnp.zeros((rows, cols), jnp.float32)
    slab = slab.at[:h, :din].set(w1.astype(jnp.float32))
    slab = slab.at[:h, din].set(b1.astype(jnp.float32))
    slab = slab.at[:dout, din + 1:din + 1 + h].set(w2.astype(jnp.float32))
    slab = slab.at[:dout, din + 1 + h].set(b2.astype(jnp.float32))
    return slab


def _make_ednn_kernel(din, hidden, dout):
    prec = jax.lax.Precision.HIGHEST

    def kernel(p_ref, xt_ref, ot_ref):
        # Single VMEM-resident parameter slab; static value slices are cheap.
        p = p_ref[...]
        w1 = p[:hidden, :din]                               # (H, Din)
        b1 = p[:hidden, din:din + 1]                        # (H, 1)
        w2 = p[:dout, din + 1:din + 1 + hidden]             # (Dout, H)
        b2 = p[:dout, din + 1 + hidden:din + 2 + hidden]    # (Dout, 1)

        xt = xt_ref[...]                                    # (Din, TN), lane-dense

        # hidden^T = relu(W1 @ X^T + b1)   -- MXU matmul, f32 acc, VPU relu.
        ht = jnp.dot(w1, xt, preferred_element_type=jnp.float32, precision=prec)
        ht = jnp.maximum(ht + b1, 0.0)                      # (H, TN), value-resident

        # out^T = W2 @ hidden^T + b2       -- one unmasked, lane-dense store.
        ot = jnp.dot(w2, ht, preferred_element_type=jnp.float32, precision=prec)
        ot_ref[...] = (ot + b2).astype(ot_ref.dtype)

    return kernel


def ednn_apply(params_slab, x, *, din, hidden, dout, tn=512):
    """Fused EDNN forward. x: (N, din) -> (N, dout), f32."""
    n = x.shape[0]
    # Lane tile: a multiple of 128, no larger than the (padded) batch.
    tn_eff = max(128, min(tn, _round_up(n, 128)))
    n_pad = _round_up(n, tn_eff)

    # Batch onto the lane axis (endorsed wrapper-side relayout); pad if needed.
    xt = jnp.transpose(x.astype(jnp.float32))               # (din, N)
    if n_pad != n:
        xt = jnp.pad(xt, ((0, 0), (0, n_pad - n)))

    grid = (n_pad // tn_eff,)

    cost = pl.CostEstimate(
        flops=2 * n_pad * din * hidden + 2 * n_pad * hidden * dout
        + n_pad * (hidden + dout),
        transcendentals=0,
        bytes_accessed=4 * (params_slab.size + din * n_pad + dout * n_pad),
    )

    out_t = pl.pallas_call(
        _make_ednn_kernel(din, hidden, dout),
        out_shape=jax.ShapeDtypeStruct((dout, n_pad), jnp.float32),
        grid=grid,
        in_specs=[
            # Parameter slab: constant index_map -> stays resident, no re-DMA.
            pl.BlockSpec(params_slab.shape, lambda i: (0, 0)),
            # X^T tiles stream along the batch (lane) axis.
            pl.BlockSpec((din, tn_eff), lambda i: (0, i)),
        ],
        out_specs=pl.BlockSpec((dout, tn_eff), lambda i: (0, i)),
        compiler_params=pltpu.CompilerParams(
            dimension_semantics=("parallel",)),
        cost_estimate=cost,
    )(params_slab, xt)

    return jnp.transpose(out_t[:, :n])                      # (N, dout)


def ednn_forward(x, w1, b1, w2, b2, *, tn=512):
    """Convenience wrapper taking PyTorch-layout params.

    For deployments, call prepare_ednn_params once at init and reuse the slab
    with ednn_apply; under jit with static params this prep constant-folds.
    """
    h, din = w1.shape
    dout = w2.shape[0]
    return ednn_apply(prepare_ednn_params(w1, b1, w2, b2), x,
                      din=din, hidden=h, dout=dout, tn=tn)


if __name__ == "__main__":
    # Dims consistent with the module: in_dim=16, hidden_dim=32, out_dim=4.
    # Batch is a small multiple of 128 so the lane-dense batched layout and
    # the 1-D "parallel" grid (2 steps of TN=256) are exercised.
    N, Din, H, Dout = 512, 16, 32, 4
    key = jax.random.PRNGKey(0)
    kx, kw1, kb1, kw2, kb2 = jax.random.split(key, 5)

    x = jax.random.normal(kx, (N, Din), dtype=jnp.float32)

    # nn.Linear default init: uniform(-1/sqrt(fan_in), 1/sqrt(fan_in)).
    bound1 = 1.0 / jnp.sqrt(jnp.float32(Din))
    w1 = jax.random.uniform(kw1, (H, Din), jnp.float32, -bound1, bound1)
    b1 = jax.random.uniform(kb1, (H,), jnp.float32, -bound1, bound1)
    bound2 = 1.0 / jnp.sqrt(jnp.float32(H))
    w2 = jax.random.uniform(kw2, (Dout, H), jnp.float32, -bound2, bound2)
    b2 = jax.random.uniform(kb2, (Dout,), jnp.float32, -bound2, bound2)

    # Pack the parameters once (hoisted out of the per-call path).
    params = prepare_ednn_params(w1, b1, w2, b2)
    forward = jax.jit(functools.partial(
        ednn_apply, din=Din, hidden=H, dout=Dout, tn=256))

    out = jax.block_until_ready(forward(params, x))

    # Pure-JAX reference of the PyTorch semantics (same matmul precision).
    prec = jax.lax.Precision.HIGHEST
    hidden_ref = jnp.maximum(jnp.dot(x, w1.T, precision=prec) + b1, 0.0)
    out_ref = jnp.dot(hidden_ref, w2.T, precision=prec) + b2

    assert out.shape == (N, Dout)
    assert jnp.allclose(out, out_ref, atol=1e-4, rtol=1e-4), (
        float(jnp.max(jnp.abs(out - out_ref))))
    print("KERNEL_OK")
</pallas_src>

<mosaic_0001>
module attributes {stable_mosaic.version = 11 : i64} {
  func.func @kernel(%arg0: i32, %arg1: memref<32x50xf32, #tpu.memory_space<vmem>>, %arg2: memref<16x256xf32, #tpu.memory_space<vmem>>, %arg3: memref<4x256xf32, #tpu.memory_space<vmem>>) attributes {dimension_semantics = [#tpu.dimension_semantics<parallel>], iteration_bounds = array<i64: 2>, scalar_prefetch = 0 : i64, scratch_operands = 0 : i64, tpu.core_type = #tpu.core_type<tc>, window_params = [{pipeline_mode = #tpu.pipeline_mode<synchronous>, transform_indices = @transform_0, window_bounds = array<i64: 32, 50>}, {transform_indices = @transform_1, window_bounds = array<i64: 16, 256>}, {transform_indices = @transform_2, window_bounds = array<i64: 4, 256>}]} {
    %c0 = arith.constant 0 : index
    %c0_0 = arith.constant 0 : index
    %0 = vector.load %arg1[%c0, %c0_0] : memref<32x50xf32, #tpu.memory_space<vmem>>, vector<32x50xf32>
    %1 = vector.extract_strided_slice %0 {offsets = [0, 0], sizes = [32, 16], strides = [1, 1]} : vector<32x50xf32> to vector<32x16xf32>
    %2 = vector.extract_strided_slice %0 {offsets = [0, 16], sizes = [32, 1], strides = [1, 1]} : vector<32x50xf32> to vector<32x1xf32>
    %3 = vector.extract_strided_slice %0 {offsets = [0, 17], sizes = [4, 32], strides = [1, 1]} : vector<32x50xf32> to vector<4x32xf32>
    %4 = vector.extract_strided_slice %0 {offsets = [0, 49], sizes = [4, 1], strides = [1, 1]} : vector<32x50xf32> to vector<4x1xf32>
    %c0_1 = arith.constant 0 : index
    %c0_2 = arith.constant 0 : index
    %5 = vector.load %arg2[%c0_1, %c0_2] : memref<16x256xf32, #tpu.memory_space<vmem>>, vector<16x256xf32>
    %cst = arith.constant dense<0.000000e+00> : vector<32x256xf32>
    %6 = tpu.matmul %1, %5, %cst {dimension_numbers = #tpu.dot_dimension_numbers<[1], [0], [0], [1], [0, 0, 1, 1], [], []>, precision = #tpu.contract_precision<fp32>} : vector<32x16xf32>, vector<16x256xf32>, vector<32x256xf32> -> vector<32x256xf32>
    %7 = vector.broadcast %2 : vector<32x1xf32> to vector<32x256xf32>
    %8 = arith.addf %6, %7 : vector<32x256xf32>
    %cst_3 = arith.constant 0.000000e+00 : f32
    %9 = vector.broadcast %cst_3 : f32 to vector<32x256xf32>
    %10 = arith.maximumf %8, %9 : vector<32x256xf32>
    %cst_4 = arith.constant dense<0.000000e+00> : vector<4x256xf32>
    %11 = tpu.matmul %3, %10, %cst_4 {dimension_numbers = #tpu.dot_dimension_numbers<[1], [0], [0], [1], [0, 0, 1, 1], [], []>, precision = #tpu.contract_precision<fp32>} : vector<4x32xf32>, vector<32x256xf32>, vector<4x256xf32> -> vector<4x256xf32>
    %12 = vector.broadcast %4 : vector<4x1xf32> to vector<4x256xf32>
    %13 = arith.addf %11, %12 : vector<4x256xf32>
    %c0_5 = arith.constant 0 : index
    %c0_6 = arith.constant 0 : index
    %14 = vector.load %arg3[%c0_5, %c0_6] : memref<4x256xf32, #tpu.memory_space<vmem>>, vector<4x256xf32>
    tpu.vector_store %arg3[%c0_5, %c0_6], %13 {strides = array<i32>} : memref<4x256xf32, #tpu.memory_space<vmem>>, vector<4x256xf32>,
    return
  }
  func.func @transform_0(%arg0: i32) -> (i32, i32) {
    %c0_i32 = arith.constant 0 : i32
    %c0_i32_0 = arith.constant 0 : i32
    %c0_i32_1 = arith.constant 0 : i32
    return %c0_i32, %c0_i32_0 : i32, i32
  }
  func.func @transform_1(%arg0: i32) -> (i32, i32) {
    %c0_i32 = arith.constant 0 : i32
    %c0_i32_0 = arith.constant 0 : i32
    return %c0_i32, %arg0 : i32, i32
  }
  func.func @transform_2(%arg0: i32) -> (i32, i32) {
    %c0_i32 = arith.constant 0 : i32
    %c0_i32_0 = arith.constant 0 : i32
    return %c0_i32, %arg0 : i32, i32
  }
}

</mosaic_0001>

<llo_original>
// kernel: ednn_apply.1
$region0: #{ednn_apply.1}
  #allocation0 [shape = 'u32[]', space=smem, size = 0x4, offset = 0x4, fixed_abs, tag = 'smem constant byte address 0x4 - core index']
  #allocation1 [shape = 'u32[144,128]{1,0:T(1,128)}', space=vmem, size = 0x12000, scoped, tag = 'internal scratch']
  %s0 = inlined_call_operand.hbm [shape: f32[32,50], index: 0, kind: input, shape index: {}]
  %s1 = inlined_call_operand.hbm [shape: f32[16,512], index: 1, kind: input, shape index: {}]
  %s2 = inlined_call_operand.hbm [shape: f32[4,512], index: 2, kind: output, shape index: {}]
  %s3 = sld [smem:[#allocation0]]
  $region49: #{ednn_apply.1} parent=0
    _
  %s5 = ssub.s32 1, %s3
  %s6 = scalar_select 0, %s5, %s3
  $region1: #{ednn_apply.1} parent=0
    #allocation2 [shape = 'u8[16384]{0}', space=vmem, size = 0x4000, scoped, tag = 'input window, operand 0, single buffered']
    #allocation3 [shape = 's32[2]{0}', space=sflag, size = 0x8, scoped, tag = 'scoped memory for ednn_apply.1']
    #allocation4 [shape = 's32[2]{0}', space=sflag, size = 0x8, scoped, tag = 'scoped memory for ednn_apply.1']
    #allocation5 [shape = 'u8[32768]{0}', space=vmem, size = 0x8000, scoped, tag = 'input window, operand 1']
    #allocation6 [shape = 's32[2]{0}', space=sflag, size = 0x8, scoped, tag = 'scoped memory for ednn_apply.1']
    #allocation7 [shape = 'u8[8192]{0}', space=vmem, size = 0x2000, scoped, tag = 'output window, operand 0']
    %7 = vsyncpa [#allocation3], 0
    %8 = vsyncpa [#allocation6], 0
    %s9 = scalar_lea.sflag [#allocation6], 1
    %10 = vsyncpa %s9, 0
    %11 = vsyncpa [#allocation4], 0
    %s12 = scalar_lea.sflag [#allocation4], 1
    %13 = vsyncpa %s12, 0
    loop: start=0, step=1, limit=4
    $region2: #{ednn_apply.1} parent=1 // loop_pre_header
      _
    $region3: #{ednn_apply.1} parent=1 // loop_header
      %s15 = sphi 0, %s19
      %p16 = scmp.ge.s32.totalorder %s15, 4
      %s23 = sphi 0, %s23
      %s25 = sphi 0, %s23
      %s26 = sphi 0, %s25
      %s40 = sphi 0, %s26
      %s46 = sphi 0, %s48
      %s49 = sphi 0, %s46
      %s50 = sphi 0, %s49
      %s66 = sphi 0, %s50
      %s72 = sphi 0, %s74
      %s75 = sphi 0, %s72
      %s76 = sphi 0, %s75
      %s92 = sphi 0, %s76
    $region4: #{ednn_apply.1} parent=1 // loop_header_branch
      %18 = sbr.rel (%p16) target = $region8
    $region5: #{ednn_apply.1} parent=1 // loop_body
      %s20 = ssub.s32 %s15, 1
      %s21 = ssub.s32 %s15, 2
      %s22 = sadd.s32 %s15, 1
      %s24 = sadd.s32 %s23, 1
      %p27 = scmp.eq.s32.totalorder %s15, 1
      %p28 = scmp.ne.s32.totalorder %s23, %s25
      %p29 = scmp.eq.s32.totalorder %s15, 0
      %p30 = por %p28, %p29
      %p31 = scmp.ne.s32.totalorder %s23, %s25
      %p32 = scmp.eq.s32.totalorder %s20, 1
      %p33 = por %p31, %p32
      %p34 = scmp.ne.s32.totalorder %s25, %s26
      %p35 = scmp.eq.s32.totalorder %s20, 0
      %p36 = por %p34, %p35
      %p37 = scmp.ne.s32.totalorder %s25, %s26
      %p38 = scmp.eq.s32.totalorder %s21, 1
      %p39 = por %p37, %p38
      %p41 = scmp.ne.s32.totalorder %s26, %s40
      %p42 = scmp.eq.s32.totalorder %s21, 0
      %p43 = por %p41, %p42
      %s44 = ssub.s32 %s15, %s22
      %p45 = scmp.eq.s32.totalorder %s44, 0
      %s47 = sadd.s32 %s46, 1
      %s48 = scalar_select %p45, %s46, %s47
      %p51 = pneg %p45
      %p52 = scmp.eq.s32.totalorder %s15, 1
      %p53 = por %p51, %p52
      %p54 = scmp.ne.s32.totalorder %s46, %s49
      %p55 = scmp.eq.s32.totalorder %s15, 0
      %p56 = por %p54, %p55
      %p57 = scmp.ne.s32.totalorder %s46, %s49
      %p58 = scmp.eq.s32.totalorder %s20, 1
      %p59 = por %p57, %p58
      %p60 = scmp.ne.s32.totalorder %s49, %s50
      %p61 = scmp.eq.s32.totalorder %s20, 0
      %p62 = por %p60, %p61
      %p63 = scmp.ne.s32.totalorder %s49, %s50
      %p64 = scmp.eq.s32.totalorder %s21, 1
      %p65 = por %p63, %p64
      %p67 = scmp.ne.s32.totalorder %s50, %s66
      %p68 = scmp.eq.s32.totalorder %s21, 0
      %p69 = por %p67, %p68
      %s70 = ssub.s32 %s15, %s22
      %p71 = scmp.eq.s32.totalorder %s70, 0
      %s73 = sadd.s32 %s72, 1
      %s74 = scalar_select %p71, %s72, %s73
      %p77 = pneg %p71
      %p78 = scmp.eq.s32.totalorder %s15, 1
      %p79 = por %p77, %p78
      %p80 = scmp.ne.s32.totalorder %s72, %s75
      %p81 = scmp.eq.s32.totalorder %s15, 0
      %p82 = por %p80, %p81
      %p83 = scmp.ne.s32.totalorder %s72, %s75
      %p84 = scmp.eq.s32.totalorder %s20, 1
      %p85 = por %p83, %p84
      %p86 = scmp.ne.s32.totalorder %s75, %s76
      %p87 = scmp.eq.s32.totalorder %s20, 0
      %p88 = por %p86, %p87
      %p89 = scmp.ne.s32.totalorder %s75, %s76
      %p90 = scmp.eq.s32.totalorder %s21, 1
      %p91 = por %p89, %p90
      %p93 = scmp.ne.s32.totalorder %s76, %s92
      %p94 = scmp.eq.s32.totalorder %s21, 0
      %p95 = por %p93, %p94
      %p96 = scmp.le.s32.totalorder 1, %s15
      %p97 = scmp.lt.s32.totalorder %s15, 3
      %p98 = pnand %p96, %p97
      %p99 = pneg %p98
      // Predicated region
      $region9: #{ednn_apply.1} parent=5 // pred_check
        _
      $region10: #{ednn_apply.1} parent=5 // pred_check_branch
        %101 = sbr.rel (%p98) target = $region12
      $region11: #{ednn_apply.1} parent=5 // pred_region
        %s102 = ssub.s32 %s15, 1
        // Predicated region
        $region13: #{ednn_apply.1} parent=11 // pred_check
          %p103 = pneg %p36
        $region14: #{ednn_apply.1} parent=11 // pred_check_branch
          %105 = sbr.rel (%p103) target = $region16
        $region15: #{ednn_apply.1} parent=11 // pred_region
          %s107 = ssub.s32 512, 512
          %108 = vsyncadd [#allocation3], %s107
          %s109 = sshll.u32 [#allocation2], 4
          %s110 = int_to_ptr.vmem [resolvable:$true] %s109
          %115 = dma.hbm_to_vmem [thread:$0]  %s0, 512, %s110, [#allocation3], 128, 128, 8
        $region16: #{ednn_apply.1} parent=11 // pred_fallthru
          _
      $region12: #{ednn_apply.1} parent=5 // pred_fallthru
        _
      %p116 = scmp.lt.s32.totalorder %s15, 2
      // Predicated region
      $region17: #{ednn_apply.1} parent=5 // pred_check
        %p117 = pneg %p116
      $region18: #{ednn_apply.1} parent=5 // pred_check_branch
        %119 = sbr.rel (%p117) target = $region20
      $region19: #{ednn_apply.1} parent=5 // pred_region
        // Predicated region
        $region21: #{ednn_apply.1} parent=19 // pred_check
          %p120 = pneg %p56
        $region22: #{ednn_apply.1} parent=19 // pred_check_branch
          %122 = sbr.rel (%p120) target = $region24
        $region23: #{ednn_apply.1} parent=19 // pred_region
          %s123 = sand.u32 %s46, 1
          %s124 = scalar_lea.sflag [#allocation6], %s123
          %s125 = sand.u32 %s46, 1
          %s126 = smul.addr %s125, 32
          %s127 = scalar_lea.vmem [#allocation5], %s126
          %s128 = smul.u32 2, %s15
          %s130 = ssub.s32 512, 512
          %131 = vsyncadd %s124, %s130
          %s132 = smul.addr %s128, 128
          %s133 = scalar_lea.hbm %s1, %s132
          %s134 = sshll.u32 %s127, 4
          %s135 = int_to_ptr.vmem [resolvable:$true] %s134
          %140 = dma.hbm_to_vmem [thread:$0]  %s133, 512, %s135, %s124, 512, 256, 16
        $region24: #{ednn_apply.1} parent=19 // pred_fallthru
          _
      $region20: #{ednn_apply.1} parent=5 // pred_fallthru
        _
      %p141 = scmp.le.s32.totalorder 1, %s15
      %p142 = scmp.lt.s32.totalorder %s15, 3
      %p143 = pnand %p141, %p142
      %p144 = pneg %p143
      // Predicated region
      $region25: #{ednn_apply.1} parent=5 // pred_check
        _
      $region26: #{ednn_apply.1} parent=5 // pred_check_branch
        %146 = sbr.rel (%p143) target = $region28
      $region27: #{ednn_apply.1} parent=5 // pred_region
        %s147 = ssub.s32 %s15, 1
        // Predicated region
        $region29: #{ednn_apply.1} parent=27 // pred_check
          %p148 = pneg %p36
        $region30: #{ednn_apply.1} parent=27 // pred_check_branch
          %150 = sbr.rel (%p148) target = $region32
        $region31: #{ednn_apply.1} parent=27 // pred_region
          %151 = dma.done [#allocation3], 512
        $region32: #{ednn_apply.1} parent=27 // pred_fallthru
          _
        %s152 = sand.u32 %s49, 1
        %s153 = scalar_lea.sflag [#allocation6], %s152
        %s154 = sand.u32 %s49, 1
        %s155 = smul.addr %s154, 32
        %s156 = scalar_lea.vmem [#allocation5], %s155
        // Predicated region
        $region33: #{ednn_apply.1} parent=27 // pred_check
          %p157 = pneg %p62
        $region34: #{ednn_apply.1} parent=27 // pred_check_branch
          %159 = sbr.rel (%p157) target = $region36
        $region35: #{ednn_apply.1} parent=27 // pred_region
          %160 = dma.done %s153, 512
        $region36: #{ednn_apply.1} parent=27 // pred_fallthru
          _
        %p161 = pneg %p36
        %p162 = pneg %p33
        %s163 = sand.u32 %s49, 1
        %s164 = scalar_lea.sflag [#allocation6], %s163
        %s165 = sand.u32 %s49, 1
        %s166 = smul.addr %s165, 32
        %s167 = scalar_lea.vmem [#allocation5], %s166
        %p168 = pneg %p62
        %p169 = pneg %p59
        %p170 = pneg %p88
        %p171 = pneg %p85
        %s172 = sand.u32 %s75, 1
        %s173 = scalar_lea.sflag [#allocation4], %s172
        %s174 = sand.u32 %s75, 1
        %s175 = smul.addr %s174, 8
        %s176 = scalar_lea.vmem [#allocation7], %s175
        %s177 = smul.u32 2, %s20
        %s178 = smul.u32 2, %s20
        %v179 = vld [vmem:[#allocation2] sm:$0xff]
        %v180 = vld [vmem:[#allocation2 + $0x8] sm:$0xff]
        %v181 = vld [vmem:[#allocation2 + $0x10] sm:$0xff]
        %v182 = vld [vmem:[#allocation2 + $0x18] sm:$0xff]
        %v183 = vld [vmem:[%s156] sm:$0xff]
        %v184 = vld [vmem:[%s156 + $0x8] sm:$0xff]
        %v185 = vld [vmem:[%s156 + $0x10] sm:$0xff]
        %v186 = vld [vmem:[%s156 + $0x18] sm:$0xff]
        %188 = vset.pattern.permute.xlu0 16
        %189 = vperm.xlu0 %188, %v179
        %v190 = vpop.permute.xlu0 %189
        %193 = vset.pattern.permute.xlu0 16
        %194 = vperm.xlu0 %193, %v180
        %v195 = vpop.permute.xlu0 %194
        %198 = vset.pattern.permute.xlu0 16
        %199 = vperm.xlu0 %198, %v181
        %v200 = vpop.permute.xlu0 %199
        %203 = vset.pattern.permute.xlu0 16
        %204 = vperm.xlu0 %203, %v182
        %v205 = vpop.permute.xlu0 %204
        %vm207 = vcmask 130048
        %v208 = vsel %vm207, %v179, 0
        %v210 = vsel %vm207, %v180, 0
        %v212 = vsel %vm207, %v181, 0
        %v214 = vsel %vm207, %v182, 0
        %216 = vmatprep.subr.mxu0 0.0
        %217 = vmatpush1.msra.mxu0 0.0
        %218 = vmatprep.subr.mxu0 0.0
        %219 = vmatpush1.msra.mxu0 0.0
        %220 = vmatprep.subr.mxu0 0.0
        %221 = vmatpush1.msra.mxu0 0.0
        %222 = vmatprep.subr.mxu0 0.0
        %223 = vmatpush1.msra.mxu0 0.0
        %224 = vmatprep.subr.mxu0 0.0
        %225 = vmatpush1.msra.mxu0 0.0
        %226 = vmatprep.subr.mxu0 0.0
        %227 = vmatpush1.msra.mxu0 0.0
        %228 = vmatprep.subr.mxu0 0.0
        %229 = vmatpush1.msra.mxu0 0.0
        %230 = vmatprep.subr.mxu0 0.0
        %231 = vmatpush1.msra.mxu0 0.0
        %232 = vmatprep.subr.mxu0 0.0
        %233 = vmatpush1.msra.mxu0 0.0
        %234 = vmatprep.subr.mxu0 0.0
        %235 = vmatpush1.msra.mxu0 0.0
        %236 = vmatprep.subr.mxu0 0.0
        %237 = vmatpush1.msra.mxu0 0.0
        %238 = vmatprep.subr.mxu0 0.0
        %239 = vmatpush1.msra.mxu0 0.0
        %240 = vmatprep.subr.mxu0 0.0
        %241 = vmatpush1.msra.mxu0 0.0
        %242 = vmatprep.subr.mxu0 0.0
        %243 = vmatpush1.msra.mxu0 0.0
        %v244 = vand.u32 %v186, 4294901760
        %245 = vmatprep.subr.mxu0 %v244
        %v246 = vand.u32 %v185, 4294901760
        %247 = vmatpush1.msra.mxu0 %v246
        %v248 = vand.u32 %v184, 4294901760
        %249 = vmatprep.subr.mxu0 %v248
        %v250 = vand.u32 %v183, 4294901760
        %251 = vmatpush1.msra.mxu0 %v250
        %252 = vmatprep.subr.mxu0 0.0
        %253 = vmatpush2.msra.mxu0 0.0
        %254 = vmatprep.subr.mxu0 0.0
        %255 = vmatpush2.msra.mxu0 0.0
        %256 = vmatprep.subr.mxu0 0.0
        %257 = vmatpush2.msra.mxu0 0.0
        %258 = vmatprep.subr.mxu0 0.0
        %259 = vmatpush2.msra.mxu0 0.0
        %260 = vmatprep.subr.mxu0 0.0
        %261 = vmatpush2.msra.mxu0 0.0
        %262 = vmatprep.subr.mxu0 0.0
        %263 = vmatpush2.msra.mxu0 0.0
        %264 = vmatprep.subr.mxu0 0.0
        %265 = vmatpush2.msra.mxu0 0.0
        %266 = vmatprep.subr.mxu0 0.0
        %267 = vmatpush2.msra.mxu0 0.0
        %268 = vmatprep.subr.mxu0 0.0
        %269 = vmatpush2.msra.mxu0 0.0
        %270 = vmatprep.subr.mxu0 0.0
        %271 = vmatpush2.msra.mxu0 0.0
        %272 = vmatprep.subr.mxu0 0.0
        %273 = vmatpush2.msra.mxu0 0.0
        %274 = vmatprep.subr.mxu0 0.0
        %275 = vmatpush2.msra.mxu0 0.0
        %276 = vmatprep.subr.mxu0 0.0
        %277 = vmatpush2.msra.mxu0 0.0
        %278 = vmatprep.subr.mxu0 0.0
        %279 = vmatpush2.msra.mxu0 0.0
        %280 = vmatprep.subr.mxu0 0.0
        %281 = vmatpush2.msra.mxu0 0.0
        %282 = vmatprep.subr.mxu0 0.0
        %283 = vmatpush2.msra.mxu0 0.0
        %284 = vmatprep.mubr.f32.mxu0 0.0
        %v285 = vand.u32 %v208, 4294901760
        %v286 = vsub.f32 %v208, %v285
        %v287 = vand.u32 %v286, 4294901760
        %v288 = vsub.f32 %v286, %v287
        %v289 = vand.u32 %v288, 4294901760
        %290 = vmatmul.mubr.f32.gmra.mxu0 %v289
        %v291 = vpop.f32.mrf.mxu0
        %v292 = vadd.f32 %v190, %v291
        %v293 = vpop.f32.mrf.mxu0
        %v294 = vadd.f32 %v190, %v293
        %295 = vmatprep.mubr.f32.mxu0 0.0
        %v296 = vand.u32 %v210, 4294901760
        %v297 = vsub.f32 %v210, %v296
        %v298 = vand.u32 %v297, 4294901760
        %v299 = vsub.f32 %v297, %v298
        %v300 = vand.u32 %v299, 4294901760
        %301 = vmatmul.mubr.f32.gmra.mxu0 %v300
        %v302 = vpop.f32.mrf.mxu0
        %v303 = vadd.f32 %v195, %v302
        %v304 = vpop.f32.mrf.mxu0
        %v305 = vadd.f32 %v195, %v304
        %306 = vmatprep.mubr.f32.mxu0 0.0
        %v307 = vand.u32 %v212, 4294901760
        %v308 = vsub.f32 %v212, %v307
        %v309 = vand.u32 %v308, 4294901760
        %v310 = vsub.f32 %v308, %v309
        %v311 = vand.u32 %v310, 4294901760
        %312 = vmatmul.mubr.f32.gmra.mxu0 %v311
        %v313 = vpop.f32.mrf.mxu0
        %v314 = vadd.f32 %v200, %v313
        %v315 = vpop.f32.mrf.mxu0
        %v316 = vadd.f32 %v200, %v315
        %317 = vmatprep.mubr.f32.mxu0 0.0
        %v318 = vand.u32 %v214, 4294901760
        %v319 = vsub.f32 %v214, %v318
        %v320 = vand.u32 %v319, 4294901760
        %v321 = vsub.f32 %v319, %v320
        %v322 = vand.u32 %v321, 4294901760
        %323 = vmatmul.mubr.f32.gmra.mxu0 %v322
        %v324 = vpop.f32.mrf.mxu0
        %v325 = vadd.f32 %v205, %v324
        %v326 = vpop.f32.mrf.mxu0
        %v327 = vadd.f32 %v205, %v326
        %328 = vdwg.mxu0
        %329 = vmatprep.subr.mxu0 0.0
        %330 = vmatpush1.msra.mxu0 0.0
        %331 = vmatprep.subr.mxu0 0.0
        %332 = vmatpush1.msra.mxu0 0.0
        %333 = vmatprep.subr.mxu0 0.0
        %334 = vmatpush1.msra.mxu0 0.0
        %335 = vmatprep.subr.mxu0 0.0
        %336 = vmatpush1.msra.mxu0 0.0
        %337 = vmatprep.subr.mxu0 0.0
        %338 = vmatpush1.msra.mxu0 0.0
        %339 = vmatprep.subr.mxu0 0.0
        %340 = vmatpush1.msra.mxu0 0.0
        %341 = vmatprep.subr.mxu0 0.0
        %342 = vmatpush1.msra.mxu0 0.0
        %343 = vmatprep.subr.mxu0 0.0
        %344 = vmatpush1.msra.mxu0 0.0
        %345 = vmatprep.subr.mxu0 0.0
        %346 = vmatpush1.msra.mxu0 0.0
        %347 = vmatprep.subr.mxu0 0.0
        %348 = vmatpush1.msra.mxu0 0.0
        %349 = vmatprep.subr.mxu0 0.0
        %350 = vmatpush1.msra.mxu0 0.0
        %351 = vmatprep.subr.mxu0 0.0
        %352 = vmatpush1.msra.mxu0 0.0
        %353 = vmatprep.subr.mxu0 0.0
        %354 = vmatpush1.msra.mxu0 0.0
        %355 = vmatprep.subr.mxu0 0.0
        %356 = vmatpush1.msra.mxu0 0.0
        %v357 = vand.u32 %v186, 4294901760
        %v358 = vsub.f32 %v186, %v357
        %v359 = vand.u32 %v358, 4294901760
        %v360 = vsub.f32 %v358, %v359
        %v361 = vand.u32 %v360, 4294901760
        %362 = vmatprep.subr.mxu0 %v361
        %v363 = vand.u32 %v185, 4294901760
        %v364 = vsub.f32 %v185, %v363
        %v365 = vand.u32 %v364, 4294901760
        %v366 = vsub.f32 %v364, %v365
        %v367 = vand.u32 %v366, 4294901760
        %368 = vmatpush1.msra.mxu0 %v367
        %v369 = vand.u32 %v184, 4294901760
        %v370 = vsub.f32 %v184, %v369
        %v371 = vand.u32 %v370, 4294901760
        %v372 = vsub.f32 %v370, %v371
        %v373 = vand.u32 %v372, 4294901760
        %374 = vmatprep.subr.mxu0 %v373
        %v375 = vand.u32 %v183, 4294901760
        %v376 = vsub.f32 %v183, %v375
        %v377 = vand.u32 %v376, 4294901760
        %v378 = vsub.f32 %v376, %v377
        %v379 = vand.u32 %v378, 4294901760
        %380 = vmatpush1.msra.mxu0 %v379
        %381 = vmatprep.subr.mxu0 0.0
        %382 = vmatpush2.msra.mxu0 0.0
        %383 = vmatprep.subr.mxu0 0.0
        %384 = vmatpush2.msra.mxu0 0.0
        %385 = vmatprep.subr.mxu0 0.0
        %386 = vmatpush2.msra.mxu0 0.0
        %387 = vmatprep.subr.mxu0 0.0
        %388 = vmatpush2.msra.mxu0 0.0
        %389 = vmatprep.subr.mxu0 0.0
        %390 = vmatpush2.msra.mxu0 0.0
        %391 = vmatprep.subr.mxu0 0.0
        %392 = vmatpush2.msra.mxu0 0.0
        %393 = vmatprep.subr.mxu0 0.0
        %394 = vmatpush2.msra.mxu0 0.0
        %395 = vmatprep.subr.mxu0 0.0
        %396 = vmatpush2.msra.mxu0 0.0
        %397 = vmatprep.subr.mxu0 0.0
        %398 = vmatpush2.msra.mxu0 0.0
        %399 = vmatprep.subr.mxu0 0.0
        %400 = vmatpush2.msra.mxu0 0.0
        %401 = vmatprep.subr.mxu0 0.0
        %402 = vmatpush2.msra.mxu0 0.0
        %403 = vmatprep.subr.mxu0 0.0
        %404 = vmatpush2.msra.mxu0 0.0
        %405 = vmatprep.subr.mxu0 0.0
        %406 = vmatpush2.msra.mxu0 0.0
        %407 = vmatprep.subr.mxu0 0.0
        %408 = vmatpush2.msra.mxu0 0.0
        %409 = vmatprep.subr.mxu0 0.0
        %410 = vmatpush2.msra.mxu0 0.0
        %411 = vmatprep.subr.mxu0 0.0
        %412 = vmatpush2.msra.mxu0 0.0
        %413 = vmatprep.mubr.f32.mxu0 0.0
        %v414 = vand.u32 %v208, 4294901760
        %415 = vmatmul.mubr.f32.gmra.mxu0 %v414
        %v416 = vpop.f32.mrf.mxu0
        %v417 = vadd.f32 %v292, %v416
        %v418 = vpop.f32.mrf.mxu0
        %v419 = vadd.f32 %v294, %v418
        %420 = vmatprep.mubr.f32.mxu0 0.0
        %v421 = vand.u32 %v210, 4294901760
        %422 = vmatmul.mubr.f32.gmra.mxu0 %v421
        %v423 = vpop.f32.mrf.mxu0
        %v424 = vadd.f32 %v303, %v423
        %v425 = vpop.f32.mrf.mxu0
        %v426 = vadd.f32 %v305, %v425
        %427 = vmatprep.mubr.f32.mxu0 0.0
        %v428 = vand.u32 %v212, 4294901760
        %429 = vmatmul.mubr.f32.gmra.mxu0 %v428
        %v430 = vpop.f32.mrf.mxu0
        %v431 = vadd.f32 %v314, %v430
        %v432 = vpop.f32.mrf.mxu0
        %v433 = vadd.f32 %v316, %v432
        %434 = vmatprep.mubr.f32.mxu0 0.0
        %v435 = vand.u32 %v214, 4294901760
        %436 = vmatmul.mubr.f32.gmra.mxu0 %v435
        %v437 = vpop.f32.mrf.mxu0
        %v438 = vadd.f32 %v325, %v437
        %v439 = vpop.f32.mrf.mxu0
        %v440 = vadd.f32 %v327, %v439
        %441 = vdwg.mxu0
        %442 = vmatprep.subr.mxu0 0.0
        %443 = vmatpush1.msra.mxu0 0.0
        %444 = vmatprep.subr.mxu0 0.0
        %445 = vmatpush1.msra.mxu0 0.0
        %446 = vmatprep.subr.mxu0 0.0
        %447 = vmatpush1.msra.mxu0 0.0
        %448 = vmatprep.subr.mxu0 0.0
        %449 = vmatpush1.msra.mxu0 0.0
        %450 = vmatprep.subr.mxu0 0.0
        %451 = vmatpush1.msra.mxu0 0.0
        %452 = vmatprep.subr.mxu0 0.0
        %453 = vmatpush1.msra.mxu0 0.0
        %454 = vmatprep.subr.mxu0 0.0
        %455 = vmatpush1.msra.mxu0 0.0
        %456 = vmatprep.subr.mxu0 0.0
        %457 = vmatpush1.msra.mxu0 0.0
        %458 = vmatprep.subr.mxu0 0.0
        %459 = vmatpush1.msra.mxu0 0.0
        %460 = vmatprep.subr.mxu0 0.0
        %461 = vmatpush1.msra.mxu0 0.0
        %462 = vmatprep.subr.mxu0 0.0
        %463 = vmatpush1.msra.mxu0 0.0
        %464 = vmatprep.subr.mxu0 0.0
        %465 = vmatpush1.msra.mxu0 0.0
        %466 = vmatprep.subr.mxu0 0.0
        %467 = vmatpush1.msra.mxu0 0.0
        %468 = vmatprep.subr.mxu0 0.0
        %469 = vmatpush1.msra.mxu0 0.0
        %v470 = vand.u32 %v186, 4294901760
        %v471 = vsub.f32 %v186, %v470
        %472 = vmatprep.subr.mxu0 %v471
        %v473 = vand.u32 %v185, 4294901760
        %v474 = vsub.f32 %v185, %v473
        %475 = vmatpush1.msra.mxu0 %v474
        %v476 = vand.u32 %v184, 4294901760
        %v477 = vsub.f32 %v184, %v476
        %478 = vmatprep.subr.mxu0 %v477
        %v479 = vand.u32 %v183, 4294901760
        %v480 = vsub.f32 %v183, %v479
        %481 = vmatpush1.msra.mxu0 %v480
        %482 = vmatprep.subr.mxu0 0.0
        %483 = vmatpush2.msra.mxu0 0.0
        %484 = vmatprep.subr.mxu0 0.0
        %485 = vmatpush2.msra.mxu0 0.0
        %486 = vmatprep.subr.mxu0 0.0
        %487 = vmatpush2.msra.mxu0 0.0
        %488 = vmatprep.subr.mxu0 0.0
        %489 = vmatpush2.msra.mxu0 0.0
        %490 = vmatprep.subr.mxu0 0.0
        %491 = vmatpush2.msra.mxu0 0.0
        %492 = vmatprep.subr.mxu0 0.0
        %493 = vmatpush2.msra.mxu0 0.0
        %494 = vmatprep.subr.mxu0 0.0
        %495 = vmatpush2.msra.mxu0 0.0
        %496 = vmatprep.subr.mxu0 0.0
        %497 = vmatpush2.msra.mxu0 0.0
        %498 = vmatprep.subr.mxu0 0.0
        %499 = vmatpush2.msra.mxu0 0.0
        %500 = vmatprep.subr.mxu0 0.0
        %501 = vmatpush2.msra.mxu0 0.0
        %502 = vmatprep.subr.mxu0 0.0
        %503 = vmatpush2.msra.mxu0 0.0
        %504 = vmatprep.subr.mxu0 0.0
        %505 = vmatpush2.msra.mxu0 0.0
        %506 = vmatprep.subr.mxu0 0.0
        %507 = vmatpush2.msra.mxu0 0.0
        %508 = vmatprep.subr.mxu0 0.0
        %509 = vmatpush2.msra.mxu0 0.0
        %510 = vmatprep.subr.mxu0 0.0
        %511 = vmatpush2.msra.mxu0 0.0
        %512 = vmatprep.subr.mxu0 0.0
        %513 = vmatpush2.msra.mxu0 0.0
        %514 = vmatprep.mubr.f32.mxu0 0.0
        %v515 = vand.u32 %v208, 4294901760
        %v516 = vsub.f32 %v208, %v515
        %517 = vmatmul.mubr.f32.gmra.mxu0 %v516
        %v518 = vpop.f32.mrf.mxu0
        %v519 = vadd.f32 %v417, %v518
        %v520 = vpop.f32.mrf.mxu0
        %v521 = vadd.f32 %v419, %v520
        %522 = vmatprep.mubr.f32.mxu0 0.0
        %v523 = vand.u32 %v210, 4294901760
        %v524 = vsub.f32 %v210, %v523
        %525 = vmatmul.mubr.f32.gmra.mxu0 %v524
        %v526 = vpop.f32.mrf.mxu0
        %v527 = vadd.f32 %v424, %v526
        %v528 = vpop.f32.mrf.mxu0
        %v529 = vadd.f32 %v426, %v528
        %530 = vmatprep.mubr.f32.mxu0 0.0
        %v531 = vand.u32 %v212, 4294901760
        %v532 = vsub.f32 %v212, %v531
        %533 = vmatmul.mubr.f32.gmra.mxu0 %v532
        %v534 = vpop.f32.mrf.mxu0
        %v535 = vadd.f32 %v431, %v534
        %v536 = vpop.f32.mrf.mxu0
        %v537 = vadd.f32 %v433, %v536
        %538 = vmatprep.mubr.f32.mxu0 0.0
        %v539 = vand.u32 %v214, 4294901760
        %v540 = vsub.f32 %v214, %v539
        %541 = vmatmul.mubr.f32.gmra.mxu0 %v540
        %v542 = vpop.f32.mrf.mxu0
        %v543 = vadd.f32 %v438, %v542
        %v544 = vpop.f32.mrf.mxu0
        %v545 = vadd.f32 %v440, %v544
        %546 = vdwg.mxu0
        %547 = vmatprep.subr.mxu0 0.0
        %548 = vmatpush1.msra.mxu0 0.0
        %549 = vmatprep.subr.mxu0 0.0
        %550 = vmatpush1.msra.mxu0 0.0
        %551 = vmatprep.subr.mxu0 0.0
        %552 = vmatpush1.msra.mxu0 0.0
        %553 = vmatprep.subr.mxu0 0.0
        %554 = vmatpush1.msra.mxu0 0.0
        %555 = vmatprep.subr.mxu0 0.0
        %556 = vmatpush1.msra.mxu0 0.0
        %557 = vmatprep.subr.mxu0 0.0
        %558 = vmatpush1.msra.mxu0 0.0
        %559 = vmatprep.subr.mxu0 0.0
        %560 = vmatpush1.msra.mxu0 0.0
        %561 = vmatprep.subr.mxu0 0.0
        %562 = vmatpush1.msra.mxu0 0.0
        %563 = vmatprep.subr.mxu0 0.0
        %564 = vmatpush1.msra.mxu0 0.0
        %565 = vmatprep.subr.mxu0 0.0
        %566 = vmatpush1.msra.mxu0 0.0
        %567 = vmatprep.subr.mxu0 0.0
        %568 = vmatpush1.msra.mxu0 0.0
        %569 = vmatprep.subr.mxu0 0.0
        %570 = vmatpush1.msra.mxu0 0.0
        %571 = vmatprep.subr.mxu0 0.0
        %572 = vmatpush1.msra.mxu0 0.0
        %573 = vmatprep.subr.mxu0 0.0
        %574 = vmatpush1.msra.mxu0 0.0
        %v575 = vand.u32 %v186, 4294901760
        %576 = vmatprep.subr.mxu0 %v575
        %v577 = vand.u32 %v185, 4294901760
        %578 = vmatpush1.msra.mxu0 %v577
        %v579 = vand.u32 %v184, 4294901760
        %580 = vmatprep.subr.mxu0 %v579
        %v581 = vand.u32 %v183, 4294901760
        %582 = vmatpush1.msra.mxu0 %v581
        %583 = vmatprep.subr.mxu0 0.0
        %584 = vmatpush2.msra.mxu0 0.0
        %585 = vmatprep.subr.mxu0 0.0
        %586 = vmatpush2.msra.mxu0 0.0
        %587 = vmatprep.subr.mxu0 0.0
        %588 = vmatpush2.msra.mxu0 0.0
        %589 = vmatprep.subr.mxu0 0.0
        %590 = vmatpush2.msra.mxu0 0.0
        %591 = vmatprep.subr.mxu0 0.0
        %592 = vmatpush2.msra.mxu0 0.0
        %593 = vmatprep.subr.mxu0 0.0
        %594 = vmatpush2.msra.mxu0 0.0
        %595 = vmatprep.subr.mxu0 0.0
        %596 = vmatpush2.msra.mxu0 0.0
        %597 = vmatprep.subr.mxu0 0.0
        %598 = vmatpush2.msra.mxu0 0.0
        %599 = vmatprep.subr.mxu0 0.0
        %600 = vmatpush2.msra.mxu0 0.0
        %601 = vmatprep.subr.mxu0 0.0
        %602 = vmatpush2.msra.mxu0 0.0
        %603 = vmatprep.subr.mxu0 0.0
        %604 = vmatpush2.msra.mxu0 0.0
        %605 = vmatprep.subr.mxu0 0.0
        %606 = vmatpush2.msra.mxu0 0.0
        %607 = vmatprep.subr.mxu0 0.0
        %608 = vmatpush2.msra.mxu0 0.0
        %609 = vmatprep.subr.mxu0 0.0
        %610 = vmatpush2.msra.mxu0 0.0
        %611 = vmatprep.subr.mxu0 0.0
        %612 = vmatpush2.msra.mxu0 0.0
        %613 = vmatprep.subr.mxu0 0.0
        %614 = vmatpush2.msra.mxu0 0.0
        %615 = vmatprep.mubr.f32.mxu0 0.0
        %v616 = vand.u32 %v208, 4294901760
        %v617 = vsub.f32 %v208, %v616
        %v618 = vand.u32 %v617, 4294901760
        %619 = vmatmul.mubr.f32.gmra.mxu0 %v618
        %v620 = vpop.f32.mrf.mxu0
        %v621 = vadd.f32 %v519, %v620
        %v622 = vpop.f32.mrf.mxu0
        %v623 = vadd.f32 %v521, %v622
        %624 = vmatprep.mubr.f32.mxu0 0.0
        %v625 = vand.u32 %v210, 4294901760
        %v626 = vsub.f32 %v210, %v625
        %v627 = vand.u32 %v626, 4294901760
        %628 = vmatmul.mubr.f32.gmra.mxu0 %v627
        %v629 = vpop.f32.mrf.mxu0
        %v630 = vadd.f32 %v527, %v629
        %v631 = vpop.f32.mrf.mxu0
        %v632 = vadd.f32 %v529, %v631
        %633 = vmatprep.mubr.f32.mxu0 0.0
        %v634 = vand.u32 %v212, 4294901760
        %v635 = vsub.f32 %v212, %v634
        %v636 = vand.u32 %v635, 4294901760
        %637 = vmatmul.mubr.f32.gmra.mxu0 %v636
        %v638 = vpop.f32.mrf.mxu0
        %v639 = vadd.f32 %v535, %v638
        %v640 = vpop.f32.mrf.mxu0
        %v641 = vadd.f32 %v537, %v640
        %642 = vmatprep.mubr.f32.mxu0 0.0
        %v643 = vand.u32 %v214, 4294901760
        %v644 = vsub.f32 %v214, %v643
        %v645 = vand.u32 %v644, 4294901760
        %646 = vmatmul.mubr.f32.gmra.mxu0 %v645
        %v647 = vpop.f32.mrf.mxu0
        %v648 = vadd.f32 %v543, %v647
        %v649 = vpop.f32.mrf.mxu0
        %v650 = vadd.f32 %v545, %v649
        %651 = vdwg.mxu0
        %652 = vmatprep.subr.mxu0 0.0
        %653 = vmatpush1.msra.mxu0 0.0
        %654 = vmatprep.subr.mxu0 0.0
        %655 = vmatpush1.msra.mxu0 0.0
        %656 = vmatprep.subr.mxu0 0.0
        %657 = vmatpush1.msra.mxu0 0.0
        %658 = vmatprep.subr.mxu0 0.0
        %659 = vmatpush1.msra.mxu0 0.0
        %660 = vmatprep.subr.mxu0 0.0
        %661 = vmatpush1.msra.mxu0 0.0
        %662 = vmatprep.subr.mxu0 0.0
        %663 = vmatpush1.msra.mxu0 0.0
        %664 = vmatprep.subr.mxu0 0.0
        %665 = vmatpush1.msra.mxu0 0.0
        %666 = vmatprep.subr.mxu0 0.0
        %667 = vmatpush1.msra.mxu0 0.0
        %668 = vmatprep.subr.mxu0 0.0
        %669 = vmatpush1.msra.mxu0 0.0
        %670 = vmatprep.subr.mxu0 0.0
        %671 = vmatpush1.msra.mxu0 0.0
        %672 = vmatprep.subr.mxu0 0.0
        %673 = vmatpush1.msra.mxu0 0.0
        %674 = vmatprep.subr.mxu0 0.0
        %675 = vmatpush1.msra.mxu0 0.0
        %676 = vmatprep.subr.mxu0 0.0
        %677 = vmatpush1.msra.mxu0 0.0
        %678 = vmatprep.subr.mxu0 0.0
        %679 = vmatpush1.msra.mxu0 0.0
        %v680 = vand.u32 %v186, 4294901760
        %v681 = vsub.f32 %v186, %v680
        %v682 = vand.u32 %v681, 4294901760
        %683 = vmatprep.subr.mxu0 %v682
        %v684 = vand.u32 %v185, 4294901760
        %v685 = vsub.f32 %v185, %v684
        %v686 = vand.u32 %v685, 4294901760
        %687 = vmatpush1.msra.mxu0 %v686
        %v688 = vand.u32 %v184, 4294901760
        %v689 = vsub.f32 %v184, %v688
        %v690 = vand.u32 %v689, 4294901760
        %691 = vmatprep.subr.mxu0 %v690
        %v692 = vand.u32 %v183, 4294901760
        %v693 = vsub.f32 %v183, %v692
        %v694 = vand.u32 %v693, 4294901760
        %695 = vmatpush1.msra.mxu0 %v694
        %696 = vmatprep.subr.mxu0 0.0
        %697 = vmatpush2.msra.mxu0 0.0
        %698 = vmatprep.subr.mxu0 0.0
        %699 = vmatpush2.msra.mxu0 0.0
        %700 = vmatprep.subr.mxu0 0.0
        %701 = vmatpush2.msra.mxu0 0.0
        %702 = vmatprep.subr.mxu0 0.0
        %703 = vmatpush2.msra.mxu0 0.0
        %704 = vmatprep.subr.mxu0 0.0
        %705 = vmatpush2.msra.mxu0 0.0
        %706 = vmatprep.subr.mxu0 0.0
        %707 = vmatpush2.msra.mxu0 0.0
        %708 = vmatprep.subr.mxu0 0.0
        %709 = vmatpush2.msra.mxu0 0.0
        %710 = vmatprep.subr.mxu0 0.0
        %711 = vmatpush2.msra.mxu0 0.0
        %712 = vmatprep.subr.mxu0 0.0
        %713 = vmatpush2.msra.mxu0 0.0
        %714 = vmatprep.subr.mxu0 0.0
        %715 = vmatpush2.msra.mxu0 0.0
        %716 = vmatprep.subr.mxu0 0.0
        %717 = vmatpush2.msra.mxu0 0.0
        %718 = vmatprep.subr.mxu0 0.0
        %719 = vmatpush2.msra.mxu0 0.0
        %720 = vmatprep.subr.mxu0 0.0
        %721 = vmatpush2.msra.mxu0 0.0
        %722 = vmatprep.subr.mxu0 0.0
        %723 = vmatpush2.msra.mxu0 0.0
        %724 = vmatprep.subr.mxu0 0.0
        %725 = vmatpush2.msra.mxu0 0.0
        %726 = vmatprep.subr.mxu0 0.0
        %727 = vmatpush2.msra.mxu0 0.0
        %728 = vmatprep.mubr.f32.mxu0 0.0
        %v729 = vand.u32 %v208, 4294901760
        %730 = vmatmul.mubr.f32.gmra.mxu0 %v729
        %v731 = vpop.f32.mrf.mxu0
        %v732 = vadd.f32 %v621, %v731
        %v733 = vpop.f32.mrf.mxu0
        %v734 = vadd.f32 %v623, %v733
        %735 = vmatprep.mubr.f32.mxu0 0.0
        %v736 = vand.u32 %v210, 4294901760
        %737 = vmatmul.mubr.f32.gmra.mxu0 %v736
        %v738 = vpop.f32.mrf.mxu0
        %v739 = vadd.f32 %v630, %v738
        %v740 = vpop.f32.mrf.mxu0
        %v741 = vadd.f32 %v632, %v740
        %742 = vmatprep.mubr.f32.mxu0 0.0
        %v743 = vand.u32 %v212, 4294901760
        %744 = vmatmul.mubr.f32.gmra.mxu0 %v743
        %v745 = vpop.f32.mrf.mxu0
        %v746 = vadd.f32 %v639, %v745
        %v747 = vpop.f32.mrf.mxu0
        %v748 = vadd.f32 %v641, %v747
        %749 = vmatprep.mubr.f32.mxu0 0.0
        %v750 = vand.u32 %v214, 4294901760
        %751 = vmatmul.mubr.f32.gmra.mxu0 %v750
        %v752 = vpop.f32.mrf.mxu0
        %v753 = vadd.f32 %v648, %v752
        %v754 = vpop.f32.mrf.mxu0
        %v755 = vadd.f32 %v650, %v754
        %756 = vdwg.mxu0
        %757 = vmatprep.subr.mxu0 0.0
        %758 = vmatpush1.msra.mxu0 0.0
        %759 = vmatprep.subr.mxu0 0.0
        %760 = vmatpush1.msra.mxu0 0.0
        %761 = vmatprep.subr.mxu0 0.0
        %762 = vmatpush1.msra.mxu0 0.0
        %763 = vmatprep.subr.mxu0 0.0
        %764 = vmatpush1.msra.mxu0 0.0
        %765 = vmatprep.subr.mxu0 0.0
        %766 = vmatpush1.msra.mxu0 0.0
        %767 = vmatprep.subr.mxu0 0.0
        %768 = vmatpush1.msra.mxu0 0.0
        %769 = vmatprep.subr.mxu0 0.0
        %770 = vmatpush1.msra.mxu0 0.0
        %771 = vmatprep.subr.mxu0 0.0
        %772 = vmatpush1.msra.mxu0 0.0
        %773 = vmatprep.subr.mxu0 0.0
        %774 = vmatpush1.msra.mxu0 0.0
        %775 = vmatprep.subr.mxu0 0.0
        %776 = vmatpush1.msra.mxu0 0.0
        %777 = vmatprep.subr.mxu0 0.0
        %778 = vmatpush1.msra.mxu0 0.0
        %779 = vmatprep.subr.mxu0 0.0
        %780 = vmatpush1.msra.mxu0 0.0
        %781 = vmatprep.subr.mxu0 0.0
        %782 = vmatpush1.msra.mxu0 0.0
        %783 = vmatprep.subr.mxu0 0.0
        %784 = vmatpush1.msra.mxu0 0.0
        %v785 = vand.u32 %v186, 4294901760
        %786 = vmatprep.subr.mxu0 %v785
        %v787 = vand.u32 %v185, 4294901760
        %788 = vmatpush1.msra.mxu0 %v787
        %v789 = vand.u32 %v184, 4294901760
        %790 = vmatprep.subr.mxu0 %v789
        %v791 = vand.u32 %v183, 4294901760
        %792 = vmatpush1.msra.mxu0 %v791
        %793 = vmatprep.subr.mxu0 0.0
        %794 = vmatpush2.msra.mxu0 0.0
        %795 = vmatprep.subr.mxu0 0.0
        %796 = vmatpush2.msra.mxu0 0.0
        %797 = vmatprep.subr.mxu0 0.0
        %798 = vmatpush2.msra.mxu0 0.0
        %799 = vmatprep.subr.mxu0 0.0
        %800 = vmatpush2.msra.mxu0 0.0
        %801 = vmatprep.subr.mxu0 0.0
        %802 = vmatpush2.msra.mxu0 0.0
        %803 = vmatprep.subr.mxu0 0.0
        %804 = vmatpush2.msra.mxu0 0.0
        %805 = vmatprep.subr.mxu0 0.0
        %806 = vmatpush2.msra.mxu0 0.0
        %807 = vmatprep.subr.mxu0 0.0
        %808 = vmatpush2.msra.mxu0 0.0
        %809 = vmatprep.subr.mxu0 0.0
        %810 = vmatpush2.msra.mxu0 0.0
        %811 = vmatprep.subr.mxu0 0.0
        %812 = vmatpush2.msra.mxu0 0.0
        %813 = vmatprep.subr.mxu0 0.0
        %814 = vmatpush2.msra.mxu0 0.0
        %815 = vmatprep.subr.mxu0 0.0
        %816 = vmatpush2.msra.mxu0 0.0
        %817 = vmatprep.subr.mxu0 0.0
        %818 = vmatpush2.msra.mxu0 0.0
        %819 = vmatprep.subr.mxu0 0.0
        %820 = vmatpush2.msra.mxu0 0.0
        %821 = vmatprep.subr.mxu0 0.0
        %822 = vmatpush2.msra.mxu0 0.0
        %823 = vmatprep.subr.mxu0 0.0
        %824 = vmatpush2.msra.mxu0 0.0
        %825 = vmatprep.mubr.f32.mxu0 0.0
        %v826 = vand.u32 %v208, 4294901760
        %827 = vmatmul.mubr.f32.gmra.mxu0 %v826
        %v828 = vpop.f32.mrf.mxu0
        %v829 = vadd.f32 %v732, %v828
        %v830 = vpop.f32.mrf.mxu0
        %v831 = vadd.f32 %v734, %v830
        %832 = vmatprep.mubr.f32.mxu0 0.0
        %v833 = vand.u32 %v210, 4294901760
        %834 = vmatmul.mubr.f32.gmra.mxu0 %v833
        %v835 = vpop.f32.mrf.mxu0
        %v836 = vadd.f32 %v739, %v835
        %v837 = vpop.f32.mrf.mxu0
        %v838 = vadd.f32 %v741, %v837
        %839 = vmatprep.mubr.f32.mxu0 0.0
        %v840 = vand.u32 %v212, 4294901760
        %841 = vmatmul.mubr.f32.gmra.mxu0 %v840
        %v842 = vpop.f32.mrf.mxu0
        %v843 = vadd.f32 %v746, %v842
        %v844 = vpop.f32.mrf.mxu0
        %v845 = vadd.f32 %v748, %v844
        %846 = vmatprep.mubr.f32.mxu0 0.0
        %v847 = vand.u32 %v214, 4294901760
        %848 = vmatmul.mubr.f32.gmra.mxu0 %v847
        %v849 = vpop.f32.mrf.mxu0
        %v850 = vadd.f32 %v753, %v849
        %v851 = vpop.f32.mrf.mxu0
        %v852 = vadd.f32 %v755, %v851
        %853 = vdwg.mxu0
        %v854 = vmax.f32 %v829, 0.0
        %v855 = vmax.f32 %v831, 0.0
        %v856 = vmax.f32 %v836, 0.0
        %v857 = vmax.f32 %v838, 0.0
        %v858 = vmax.f32 %v843, 0.0
        %v859 = vmax.f32 %v845, 0.0
        %v860 = vmax.f32 %v850, 0.0
        %v861 = vmax.f32 %v852, 0.0
        %862 = vset.pattern.permute.xlu0 49
        %863 = vperm.xlu0 %862, %v179
        %v864 = vpop.permute.xlu0 %863
        %866 = vrot.lane.b32.xlu0 %v179, 111
        %v867 = vpop.permute.xlu0 %866
        %vm868 = vcmask 261120
        %v869 = vsel %vm868, %v867, 0
        %871 = vmatprep.subr.mxu0 0.0
        %872 = vmatpush1.msra.mxu0 0.0
        %873 = vmatprep.subr.mxu0 0.0
        %874 = vmatpush1.msra.mxu0 0.0
        %875 = vmatprep.subr.mxu0 0.0
        %876 = vmatpush1.msra.mxu0 0.0
        %877 = vmatprep.subr.mxu0 0.0
        %878 = vmatpush1.msra.mxu0 0.0
        %879 = vmatprep.subr.mxu0 0.0
        %880 = vmatpush1.msra.mxu0 0.0
        %881 = vmatprep.subr.mxu0 0.0
        %882 = vmatpush1.msra.mxu0 0.0
        %883 = vmatprep.subr.mxu0 0.0
        %884 = vmatpush1.msra.mxu0 0.0
        %885 = vmatprep.subr.mxu0 0.0
        %886 = vmatpush1.msra.mxu0 0.0
        %887 = vmatprep.subr.mxu0 0.0
        %888 = vmatpush1.msra.mxu0 0.0
        %889 = vmatprep.subr.mxu0 0.0
        %890 = vmatpush1.msra.mxu0 0.0
        %891 = vmatprep.subr.mxu0 0.0
        %892 = vmatpush1.msra.mxu0 0.0
        %893 = vmatprep.subr.mxu0 0.0
        %894 = vmatpush1.msra.mxu0 0.0
        %v895 = vand.u32 %v861, 4294901760
        %896 = vmatprep.subr.mxu0 %v895
        %v897 = vand.u32 %v860, 4294901760
        %898 = vmatpush1.msra.mxu0 %v897
        %v899 = vand.u32 %v859, 4294901760
        %900 = vmatprep.subr.mxu0 %v899
        %v901 = vand.u32 %v858, 4294901760
        %902 = vmatpush1.msra.mxu0 %v901
        %v903 = vand.u32 %v857, 4294901760
        %904 = vmatprep.subr.mxu0 %v903
        %v905 = vand.u32 %v856, 4294901760
        %906 = vmatpush1.msra.mxu0 %v905
        %v907 = vand.u32 %v855, 4294901760
        %908 = vmatprep.subr.mxu0 %v907
        %v909 = vand.u32 %v854, 4294901760
        %910 = vmatpush1.msra.mxu0 %v909
        %911 = vmatprep.subr.mxu0 0.0
        %912 = vmatpush2.msra.mxu0 0.0
        %913 = vmatprep.subr.mxu0 0.0
        %914 = vmatpush2.msra.mxu0 0.0
        %915 = vmatprep.subr.mxu0 0.0
        %916 = vmatpush2.msra.mxu0 0.0
        %917 = vmatprep.subr.mxu0 0.0
        %918 = vmatpush2.msra.mxu0 0.0
        %919 = vmatprep.subr.mxu0 0.0
        %920 = vmatpush2.msra.mxu0 0.0
        %921 = vmatprep.subr.mxu0 0.0
        %922 = vmatpush2.msra.mxu0 0.0
        %923 = vmatprep.subr.mxu0 0.0
        %924 = vmatpush2.msra.mxu0 0.0
        %925 = vmatprep.subr.mxu0 0.0
        %926 = vmatpush2.msra.mxu0 0.0
        %927 = vmatprep.subr.mxu0 0.0
        %928 = vmatpush2.msra.mxu0 0.0
        %929 = vmatprep.subr.mxu0 0.0
        %930 = vmatpush2.msra.mxu0 0.0
        %931 = vmatprep.subr.mxu0 0.0
        %932 = vmatpush2.msra.mxu0 0.0
        %933 = vmatprep.subr.mxu0 0.0
        %934 = vmatpush2.msra.mxu0 0.0
        %935 = vmatprep.subr.mxu0 0.0
        %936 = vmatpush2.msra.mxu0 0.0
        %937 = vmatprep.subr.mxu0 0.0
        %938 = vmatpush2.msra.mxu0 0.0
        %939 = vmatprep.subr.mxu0 0.0
        %940 = vmatpush2.msra.mxu0 0.0
        %941 = vmatprep.subr.mxu0 0.0
        %942 = vmatpush2.msra.mxu0 0.0
        %943 = vmatprep.mubr.f32.mxu0 0.0
        %v944 = vand.u32 %v869, 4294901760
        %v945 = vsub.f32 %v869, %v944
        %v946 = vand.u32 %v945, 4294901760
        %v947 = vsub.f32 %v945, %v946
        %v948 = vand.u32 %v947, 4294901760
        %949 = vmatmul.mubr.f32.gmra.mxu0 %v948
        %v950 = vpop.f32.mrf.mxu0
        %v951 = vadd.f32 %v864, %v950
        %v952 = vpop.f32.mrf.mxu0
        %v953 = vadd.f32 %v864, %v952
        %954 = vdwg.mxu0
        %955 = vmatprep.subr.mxu0 0.0
        %956 = vmatpush1.msra.mxu0 0.0
        %957 = vmatprep.subr.mxu0 0.0
        %958 = vmatpush1.msra.mxu0 0.0
        %959 = vmatprep.subr.mxu0 0.0
        %960 = vmatpush1.msra.mxu0 0.0
        %961 = vmatprep.subr.mxu0 0.0
        %962 = vmatpush1.msra.mxu0 0.0
        %963 = vmatprep.subr.mxu0 0.0
        %964 = vmatpush1.msra.mxu0 0.0
        %965 = vmatprep.subr.mxu0 0.0
        %966 = vmatpush1.msra.mxu0 0.0
        %967 = vmatprep.subr.mxu0 0.0
        %968 = vmatpush1.msra.mxu0 0.0
        %969 = vmatprep.subr.mxu0 0.0
        %970 = vmatpush1.msra.mxu0 0.0
        %971 = vmatprep.subr.mxu0 0.0
        %972 = vmatpush1.msra.mxu0 0.0
        %973 = vmatprep.subr.mxu0 0.0
        %974 = vmatpush1.msra.mxu0 0.0
        %975 = vmatprep.subr.mxu0 0.0
        %976 = vmatpush1.msra.mxu0 0.0
        %977 = vmatprep.subr.mxu0 0.0
        %978 = vmatpush1.msra.mxu0 0.0
        %v979 = vand.u32 %v861, 4294901760
        %v980 = vsub.f32 %v861, %v979
        %v981 = vand.u32 %v980, 4294901760
        %v982 = vsub.f32 %v980, %v981
        %v983 = vand.u32 %v982, 4294901760
        %984 = vmatprep.subr.mxu0 %v983
        %v985 = vand.u32 %v860, 4294901760
        %v986 = vsub.f32 %v860, %v985
        %v987 = vand.u32 %v986, 4294901760
        %v988 = vsub.f32 %v986, %v987
        %v989 = vand.u32 %v988, 4294901760
        %990 = vmatpush1.msra.mxu0 %v989
        %v991 = vand.u32 %v859, 4294901760
        %v992 = vsub.f32 %v859, %v991
        %v993 = vand.u32 %v992, 4294901760
        %v994 = vsub.f32 %v992, %v993
        %v995 = vand.u32 %v994, 4294901760
        %996 = vmatprep.subr.mxu0 %v995
        %v997 = vand.u32 %v858, 4294901760
        %v998 = vsub.f32 %v858, %v997
        %v999 = vand.u32 %v998, 4294901760
        %v1000 = vsub.f32 %v998, %v999
        %v1001 = vand.u32 %v1000, 4294901760
        %1002 = vmatpush1.msra.mxu0 %v1001
        %v1003 = vand.u32 %v857, 4294901760
        %v1004 = vsub.f32 %v857, %v1003
        %v1005 = vand.u32 %v1004, 4294901760
        %v1006 = vsub.f32 %v1004, %v1005
        %v1007 = vand.u32 %v1006, 4294901760
        %1008 = vmatprep.subr.mxu0 %v1007
        %v1009 = vand.u32 %v856, 4294901760
        %v1010 = vsub.f32 %v856, %v1009
        %v1011 = vand.u32 %v1010, 4294901760
        %v1012 = vsub.f32 %v1010, %v1011
        %v1013 = vand.u32 %v1012, 4294901760
        %1014 = vmatpush1.msra.mxu0 %v1013
        %v1015 = vand.u32 %v855, 4294901760
        %v1016 = vsub.f32 %v855, %v1015
        %v1017 = vand.u32 %v1016, 4294901760
        %v1018 = vsub.f32 %v1016, %v1017
        %v1019 = vand.u32 %v1018, 4294901760
        %1020 = vmatprep.subr.mxu0 %v1019
        %v1021 = vand.u32 %v854, 4294901760
        %v1022 = vsub.f32 %v854, %v1021
        %v1023 = vand.u32 %v1022, 4294901760
        %v1024 = vsub.f32 %v1022, %v1023
        %v1025 = vand.u32 %v1024, 4294901760
        %1026 = vmatpush1.msra.mxu0 %v1025
        %1027 = vmatprep.subr.mxu0 0.0
        %1028 = vmatpush2.msra.mxu0 0.0
        %1029 = vmatprep.subr.mxu0 0.0
        %1030 = vmatpush2.msra.mxu0 0.0
        %1031 = vmatprep.subr.mxu0 0.0
        %1032 = vmatpush2.msra.mxu0 0.0
        %1033 = vmatprep.subr.mxu0 0.0
        %1034 = vmatpush2.msra.mxu0 0.0
        %1035 = vmatprep.subr.mxu0 0.0
        %1036 = vmatpush2.msra.mxu0 0.0
        %1037 = vmatprep.subr.mxu0 0.0
        %1038 = vmatpush2.msra.mxu0 0.0
        %1039 = vmatprep.subr.mxu0 0.0
        %1040 = vmatpush2.msra.mxu0 0.0
        %1041 = vmatprep.subr.mxu0 0.0
        %1042 = vmatpush2.msra.mxu0 0.0
        %1043 = vmatprep.subr.mxu0 0.0
        %1044 = vmatpush2.msra.mxu0 0.0
        %1045 = vmatprep.subr.mxu0 0.0
        %1046 = vmatpush2.msra.mxu0 0.0
        %1047 = vmatprep.subr.mxu0 0.0
        %1048 = vmatpush2.msra.mxu0 0.0
        %1049 = vmatprep.subr.mxu0 0.0
        %1050 = vmatpush2.msra.mxu0 0.0
        %1051 = vmatprep.subr.mxu0 0.0
        %1052 = vmatpush2.msra.mxu0 0.0
        %1053 = vmatprep.subr.mxu0 0.0
        %1054 = vmatpush2.msra.mxu0 0.0
        %1055 = vmatprep.subr.mxu0 0.0
        %1056 = vmatpush2.msra.mxu0 0.0
        %1057 = vmatprep.subr.mxu0 0.0
        %1058 = vmatpush2.msra.mxu0 0.0
        %1059 = vmatprep.mubr.f32.mxu0 0.0
        %v1060 = vand.u32 %v869, 4294901760
        %1061 = vmatmul.mubr.f32.gmra.mxu0 %v1060
        %v1062 = vpop.f32.mrf.mxu0
        %v1063 = vadd.f32 %v951, %v1062
        %v1064 = vpop.f32.mrf.mxu0
        %v1065 = vadd.f32 %v953, %v1064
        %1066 = vdwg.mxu0
        %1067 = vmatprep.subr.mxu0 0.0
        %1068 = vmatpush1.msra.mxu0 0.0
        %1069 = vmatprep.subr.mxu0 0.0
        %1070 = vmatpush1.msra.mxu0 0.0
        %1071 = vmatprep.subr.mxu0 0.0
        %1072 = vmatpush1.msra.mxu0 0.0
        %1073 = vmatprep.subr.mxu0 0.0
        %1074 = vmatpush1.msra.mxu0 0.0
        %1075 = vmatprep.subr.mxu0 0.0
        %1076 = vmatpush1.msra.mxu0 0.0
        %1077 = vmatprep.subr.mxu0 0.0
        %1078 = vmatpush1.msra.mxu0 0.0
        %1079 = vmatprep.subr.mxu0 0.0
        %1080 = vmatpush1.msra.mxu0 0.0
        %1081 = vmatprep.subr.mxu0 0.0
        %1082 = vmatpush1.msra.mxu0 0.0
        %1083 = vmatprep.subr.mxu0 0.0
        %1084 = vmatpush1.msra.mxu0 0.0
        %1085 = vmatprep.subr.mxu0 0.0
        %1086 = vmatpush1.msra.mxu0 0.0
        %1087 = vmatprep.subr.mxu0 0.0
        %1088 = vmatpush1.msra.mxu0 0.0
        %1089 = vmatprep.subr.mxu0 0.0
        %1090 = vmatpush1.msra.mxu0 0.0
        %v1091 = vand.u32 %v861, 4294901760
        %v1092 = vsub.f32 %v861, %v1091
        %1093 = vmatprep.subr.mxu0 %v1092
        %v1094 = vand.u32 %v860, 4294901760
        %v1095 = vsub.f32 %v860, %v1094
        %1096 = vmatpush1.msra.mxu0 %v1095
        %v1097 = vand.u32 %v859, 4294901760
        %v1098 = vsub.f32 %v859, %v1097
        %1099 = vmatprep.subr.mxu0 %v1098
        %v1100 = vand.u32 %v858, 4294901760
        %v1101 = vsub.f32 %v858, %v1100
        %1102 = vmatpush1.msra.mxu0 %v1101
        %v1103 = vand.u32 %v857, 4294901760
        %v1104 = vsub.f32 %v857, %v1103
        %1105 = vmatprep.subr.mxu0 %v1104
        %v1106 = vand.u32 %v856, 4294901760
        %v1107 = vsub.f32 %v856, %v1106
        %1108 = vmatpush1.msra.mxu0 %v1107
        %v1109 = vand.u32 %v855, 4294901760
        %v1110 = vsub.f32 %v855, %v1109
        %1111 = vmatprep.subr.mxu0 %v1110
        %v1112 = vand.u32 %v854, 4294901760
        %v1113 = vsub.f32 %v854, %v1112
        %1114 = vmatpush1.msra.mxu0 %v1113
        %1115 = vmatprep.subr.mxu0 0.0
        %1116 = vmatpush2.msra.mxu0 0.0
        %1117 = vmatprep.subr.mxu0 0.0
        %1118 = vmatpush2.msra.mxu0 0.0
        %1119 = vmatprep.subr.mxu0 0.0
        %1120 = vmatpush2.msra.mxu0 0.0
        %1121 = vmatprep.subr.mxu0 0.0
        %1122 = vmatpush2.msra.mxu0 0.0
        %1123 = vmatprep.subr.mxu0 0.0
        %1124 = vmatpush2.msra.mxu0 0.0
        %1125 = vmatprep.subr.mxu0 0.0
        %1126 = vmatpush2.msra.mxu0 0.0
        %1127 = vmatprep.subr.mxu0 0.0
        %1128 = vmatpush2.msra.mxu0 0.0
        %1129 = vmatprep.subr.mxu0 0.0
        %1130 = vmatpush2.msra.mxu0 0.0
        %1131 = vmatprep.subr.mxu0 0.0
        %1132 = vmatpush2.msra.mxu0 0.0
        %1133 = vmatprep.subr.mxu0 0.0
        %1134 = vmatpush2.msra.mxu0 0.0
        %1135 = vmatprep.subr.mxu0 0.0
        %1136 = vmatpush2.msra.mxu0 0.0
        %1137 = vmatprep.subr.mxu0 0.0
        %1138 = vmatpush2.msra.mxu0 0.0
        %1139 = vmatprep.subr.mxu0 0.0
        %1140 = vmatpush2.msra.mxu0 0.0
        %1141 = vmatprep.subr.mxu0 0.0
        %1142 = vmatpush2.msra.mxu0 0.0
        %1143 = vmatprep.subr.mxu0 0.0
        %1144 = vmatpush2.msra.mxu0 0.0
        %1145 = vmatprep.subr.mxu0 0.0
        %1146 = vmatpush2.msra.mxu0 0.0
        %1147 = vmatprep.mubr.f32.mxu0 0.0
        %v1148 = vand.u32 %v869, 4294901760
        %v1149 = vsub.f32 %v869, %v1148
        %1150 = vmatmul.mubr.f32.gmra.mxu0 %v1149
        %v1151 = vpop.f32.mrf.mxu0
        %v1152 = vadd.f32 %v1063, %v1151
        %v1153 = vpop.f32.mrf.mxu0
        %v1154 = vadd.f32 %v1065, %v1153
        %1155 = vdwg.mxu0
        %1156 = vmatprep.subr.mxu0 0.0
        %1157 = vmatpush1.msra.mxu0 0.0
        %1158 = vmatprep.subr.mxu0 0.0
        %1159 = vmatpush1.msra.mxu0 0.0
        %1160 = vmatprep.subr.mxu0 0.0
        %1161 = vmatpush1.msra.mxu0 0.0
        %1162 = vmatprep.subr.mxu0 0.0
        %1163 = vmatpush1.msra.mxu0 0.0
        %1164 = vmatprep.subr.mxu0 0.0
        %1165 = vmatpush1.msra.mxu0 0.0
        %1166 = vmatprep.subr.mxu0 0.0
        %1167 = vmatpush1.msra.mxu0 0.0
        %1168 = vmatprep.subr.mxu0 0.0
        %1169 = vmatpush1.msra.mxu0 0.0
        %1170 = vmatprep.subr.mxu0 0.0
        %1171 = vmatpush1.msra.mxu0 0.0
        %1172 = vmatprep.subr.mxu0 0.0
        %1173 = vmatpush1.msra.mxu0 0.0
        %1174 = vmatprep.subr.mxu0 0.0
        %1175 = vmatpush1.msra.mxu0 0.0
        %1176 = vmatprep.subr.mxu0 0.0
        %1177 = vmatpush1.msra.mxu0 0.0
        %1178 = vmatprep.subr.mxu0 0.0
        %1179 = vmatpush1.msra.mxu0 0.0
        %v1180 = vand.u32 %v861, 4294901760
        %1181 = vmatprep.subr.mxu0 %v1180
        %v1182 = vand.u32 %v860, 4294901760
        %1183 = vmatpush1.msra.mxu0 %v1182
        %v1184 = vand.u32 %v859, 4294901760
        %1185 = vmatprep.subr.mxu0 %v1184
        %v1186 = vand.u32 %v858, 4294901760
        %1187 = vmatpush1.msra.mxu0 %v1186
        %v1188 = vand.u32 %v857, 4294901760
        %1189 = vmatprep.subr.mxu0 %v1188
        %v1190 = vand.u32 %v856, 4294901760
        %1191 = vmatpush1.msra.mxu0 %v1190
        %v1192 = vand.u32 %v855, 4294901760
        %1193 = vmatprep.subr.mxu0 %v1192
        %v1194 = vand.u32 %v854, 4294901760
        %1195 = vmatpush1.msra.mxu0 %v1194
        %1196 = vmatprep.subr.mxu0 0.0
        %1197 = vmatpush2.msra.mxu0 0.0
        %1198 = vmatprep.subr.mxu0 0.0
        %1199 = vmatpush2.msra.mxu0 0.0
        %1200 = vmatprep.subr.mxu0 0.0
        %1201 = vmatpush2.msra.mxu0 0.0
        %1202 = vmatprep.subr.mxu0 0.0
        %1203 = vmatpush2.msra.mxu0 0.0
        %1204 = vmatprep.subr.mxu0 0.0
        %1205 = vmatpush2.msra.mxu0 0.0
        %1206 = vmatprep.subr.mxu0 0.0
        %1207 = vmatpush2.msra.mxu0 0.0
        %1208 = vmatprep.subr.mxu0 0.0
        %1209 = vmatpush2.msra.mxu0 0.0
        %1210 = vmatprep.subr.mxu0 0.0
        %1211 = vmatpush2.msra.mxu0 0.0
        %1212 = vmatprep.subr.mxu0 0.0
        %1213 = vmatpush2.msra.mxu0 0.0
        %1214 = vmatprep.subr.mxu0 0.0
        %1215 = vmatpush2.msra.mxu0 0.0
        %1216 = vmatprep.subr.mxu0 0.0
        %1217 = vmatpush2.msra.mxu0 0.0
        %1218 = vmatprep.subr.mxu0 0.0
        %1219 = vmatpush2.msra.mxu0 0.0
        %1220 = vmatprep.subr.mxu0 0.0
        %1221 = vmatpush2.msra.mxu0 0.0
        %1222 = vmatprep.subr.mxu0 0.0
        %1223 = vmatpush2.msra.mxu0 0.0
        %1224 = vmatprep.subr.mxu0 0.0
        %1225 = vmatpush2.msra.mxu0 0.0
        %1226 = vmatprep.subr.mxu0 0.0
        %1227 = vmatpush2.msra.mxu0 0.0
        %1228 = vmatprep.mubr.f32.mxu0 0.0
        %v1229 = vand.u32 %v869, 4294901760
        %v1230 = vsub.f32 %v869, %v1229
        %v1231 = vand.u32 %v1230, 4294901760
        %1232 = vmatmul.mubr.f32.gmra.mxu0 %v1231
        %v1233 = vpop.f32.mrf.mxu0
        %v1234 = vadd.f32 %v1152, %v1233
        %v1235 = vpop.f32.mrf.mxu0
        %v1236 = vadd.f32 %v1154, %v1235
        %1237 = vdwg.mxu0
        %1238 = vmatprep.subr.mxu0 0.0
        %1239 = vmatpush1.msra.mxu0 0.0
        %1240 = vmatprep.subr.mxu0 0.0
        %1241 = vmatpush1.msra.mxu0 0.0
        %1242 = vmatprep.subr.mxu0 0.0
        %1243 = vmatpush1.msra.mxu0 0.0
        %1244 = vmatprep.subr.mxu0 0.0
        %1245 = vmatpush1.msra.mxu0 0.0
        %1246 = vmatprep.subr.mxu0 0.0
        %1247 = vmatpush1.msra.mxu0 0.0
        %1248 = vmatprep.subr.mxu0 0.0
        %1249 = vmatpush1.msra.mxu0 0.0
        %1250 = vmatprep.subr.mxu0 0.0
        %1251 = vmatpush1.msra.mxu0 0.0
        %1252 = vmatprep.subr.mxu0 0.0
        %1253 = vmatpush1.msra.mxu0 0.0
        %1254 = vmatprep.subr.mxu0 0.0
        %1255 = vmatpush1.msra.mxu0 0.0
        %1256 = vmatprep.subr.mxu0 0.0
        %1257 = vmatpush1.msra.mxu0 0.0
        %1258 = vmatprep.subr.mxu0 0.0
        %1259 = vmatpush1.msra.mxu0 0.0
        %1260 = vmatprep.subr.mxu0 0.0
        %1261 = vmatpush1.msra.mxu0 0.0
        %v1262 = vand.u32 %v861, 4294901760
        %v1263 = vsub.f32 %v861, %v1262
        %v1264 = vand.u32 %v1263, 4294901760
        %1265 = vmatprep.subr.mxu0 %v1264
        %v1266 = vand.u32 %v860, 4294901760
        %v1267 = vsub.f32 %v860, %v1266
        %v1268 = vand.u32 %v1267, 4294901760
        %1269 = vmatpush1.msra.mxu0 %v1268
        %v1270 = vand.u32 %v859, 4294901760
        %v1271 = vsub.f32 %v859, %v1270
        %v1272 = vand.u32 %v1271, 4294901760
        %1273 = vmatprep.subr.mxu0 %v1272
        %v1274 = vand.u32 %v858, 4294901760
        %v1275 = vsub.f32 %v858, %v1274
        %v1276 = vand.u32 %v1275, 4294901760
        %1277 = vmatpush1.msra.mxu0 %v1276
        %v1278 = vand.u32 %v857, 4294901760
        %v1279 = vsub.f32 %v857, %v1278
        %v1280 = vand.u32 %v1279, 4294901760
        %1281 = vmatprep.subr.mxu0 %v1280
        %v1282 = vand.u32 %v856, 4294901760
        %v1283 = vsub.f32 %v856, %v1282
        %v1284 = vand.u32 %v1283, 4294901760
        %1285 = vmatpush1.msra.mxu0 %v1284
        %v1286 = vand.u32 %v855, 4294901760
        %v1287 = vsub.f32 %v855, %v1286
        %v1288 = vand.u32 %v1287, 4294901760
        %1289 = vmatprep.subr.mxu0 %v1288
        %v1290 = vand.u32 %v854, 4294901760
        %v1291 = vsub.f32 %v854, %v1290
        %v1292 = vand.u32 %v1291, 4294901760
        %1293 = vmatpush1.msra.mxu0 %v1292
        %1294 = vmatprep.subr.mxu0 0.0
        %1295 = vmatpush2.msra.mxu0 0.0
        %1296 = vmatprep.subr.mxu0 0.0
        %1297 = vmatpush2.msra.mxu0 0.0
        %1298 = vmatprep.subr.mxu0 0.0
        %1299 = vmatpush2.msra.mxu0 0.0
        %1300 = vmatprep.subr.mxu0 0.0
        %1301 = vmatpush2.msra.mxu0 0.0
        %1302 = vmatprep.subr.mxu0 0.0
        %1303 = vmatpush2.msra.mxu0 0.0
        %1304 = vmatprep.subr.mxu0 0.0
        %1305 = vmatpush2.msra.mxu0 0.0
        %1306 = vmatprep.subr.mxu0 0.0
        %1307 = vmatpush2.msra.mxu0 0.0
        %1308 = vmatprep.subr.mxu0 0.0
        %1309 = vmatpush2.msra.mxu0 0.0
        %1310 = vmatprep.subr.mxu0 0.0
        %1311 = vmatpush2.msra.mxu0 0.0
        %1312 = vmatprep.subr.mxu0 0.0
        %1313 = vmatpush2.msra.mxu0 0.0
        %1314 = vmatprep.subr.mxu0 0.0
        %1315 = vmatpush2.msra.mxu0 0.0
        %1316 = vmatprep.subr.mxu0 0.0
        %1317 = vmatpush2.msra.mxu0 0.0
        %1318 = vmatprep.subr.mxu0 0.0
        %1319 = vmatpush2.msra.mxu0 0.0
        %1320 = vmatprep.subr.mxu0 0.0
        %1321 = vmatpush2.msra.mxu0 0.0
        %1322 = vmatprep.subr.mxu0 0.0
        %1323 = vmatpush2.msra.mxu0 0.0
        %1324 = vmatprep.subr.mxu0 0.0
        %1325 = vmatpush2.msra.mxu0 0.0
        %1326 = vmatprep.mubr.f32.mxu0 0.0
        %v1327 = vand.u32 %v869, 4294901760
        %1328 = vmatmul.mubr.f32.gmra.mxu0 %v1327
        %v1329 = vpop.f32.mrf.mxu0
        %v1330 = vadd.f32 %v1234, %v1329
        %v1331 = vpop.f32.mrf.mxu0
        %v1332 = vadd.f32 %v1236, %v1331
        %1333 = vdwg.mxu0
        %1334 = vmatprep.subr.mxu0 0.0
        %1335 = vmatpush1.msra.mxu0 0.0
        %1336 = vmatprep.subr.mxu0 0.0
        %1337 = vmatpush1.msra.mxu0 0.0
        %1338 = vmatprep.subr.mxu0 0.0
        %1339 = vmatpush1.msra.mxu0 0.0
        %1340 = vmatprep.subr.mxu0 0.0
        %1341 = vmatpush1.msra.mxu0 0.0
        %1342 = vmatprep.subr.mxu0 0.0
        %1343 = vmatpush1.msra.mxu0 0.0
        %1344 = vmatprep.subr.mxu0 0.0
        %1345 = vmatpush1.msra.mxu0 0.0
        %1346 = vmatprep.subr.mxu0 0.0
        %1347 = vmatpush1.msra.mxu0 0.0
        %1348 = vmatprep.subr.mxu0 0.0
        %1349 = vmatpush1.msra.mxu0 0.0
        %1350 = vmatprep.subr.mxu0 0.0
        %1351 = vmatpush1.msra.mxu0 0.0
        %1352 = vmatprep.subr.mxu0 0.0
        %1353 = vmatpush1.msra.mxu0 0.0
        %1354 = vmatprep.subr.mxu0 0.0
        %1355 = vmatpush1.msra.mxu0 0.0
        %1356 = vmatprep.subr.mxu0 0.0
        %1357 = vmatpush1.msra.mxu0 0.0
        %v1358 = vand.u32 %v861, 4294901760
        %1359 = vmatprep.subr.mxu0 %v1358
        %v1360 = vand.u32 %v860, 4294901760
        %1361 = vmatpush1.msra.mxu0 %v1360
        %v1362 = vand.u32 %v859, 4294901760
        %1363 = vmatprep.subr.mxu0 %v1362
        %v1364 = vand.u32 %v858, 4294901760
        %1365 = vmatpush1.msra.mxu0 %v1364
        %v1366 = vand.u32 %v857, 4294901760
        %1367 = vmatprep.subr.mxu0 %v1366
        %v1368 = vand.u32 %v856, 4294901760
        %1369 = vmatpush1.msra.mxu0 %v1368
        %v1370 = vand.u32 %v855, 4294901760
        %1371 = vmatprep.subr.mxu0 %v1370
        %v1372 = vand.u32 %v854, 4294901760
        %1373 = vmatpush1.msra.mxu0 %v1372
        %1374 = vmatprep.subr.mxu0 0.0
        %1375 = vmatpush2.msra.mxu0 0.0
        %1376 = vmatprep.subr.mxu0 0.0
        %1377 = vmatpush2.msra.mxu0 0.0
        %1378 = vmatprep.subr.mxu0 0.0
        %1379 = vmatpush2.msra.mxu0 0.0
        %1380 = vmatprep.subr.mxu0 0.0
        %1381 = vmatpush2.msra.mxu0 0.0
        %1382 = vmatprep.subr.mxu0 0.0
        %1383 = vmatpush2.msra.mxu0 0.0
        %1384 = vmatprep.subr.mxu0 0.0
        %1385 = vmatpush2.msra.mxu0 0.0
        %1386 = vmatprep.subr.mxu0 0.0
        %1387 = vmatpush2.msra.mxu0 0.0
        %1388 = vmatprep.subr.mxu0 0.0
        %1389 = vmatpush2.msra.mxu0 0.0
        %1390 = vmatprep.subr.mxu0 0.0
        %1391 = vmatpush2.msra.mxu0 0.0
        %1392 = vmatprep.subr.mxu0 0.0
        %1393 = vmatpush2.msra.mxu0 0.0
        %1394 = vmatprep.subr.mxu0 0.0
        %1395 = vmatpush2.msra.mxu0 0.0
        %1396 = vmatprep.subr.mxu0 0.0
        %1397 = vmatpush2.msra.mxu0 0.0
        %1398 = vmatprep.subr.mxu0 0.0
        %1399 = vmatpush2.msra.mxu0 0.0
        %1400 = vmatprep.subr.mxu0 0.0
        %1401 = vmatpush2.msra.mxu0 0.0
        %1402 = vmatprep.subr.mxu0 0.0
        %1403 = vmatpush2.msra.mxu0 0.0
        %1404 = vmatprep.subr.mxu0 0.0
        %1405 = vmatpush2.msra.mxu0 0.0
        %1406 = vmatprep.mubr.f32.mxu0 0.0
        %v1407 = vand.u32 %v869, 4294901760
        %1408 = vmatmul.mubr.f32.gmra.mxu0 %v1407
        %v1409 = vpop.f32.mrf.mxu0
        %v1410 = vadd.f32 %v1330, %v1409
        %v1411 = vpop.f32.mrf.mxu0
        %v1412 = vadd.f32 %v1332, %v1411
        %1413 = vdwg.mxu0
        %v1416 = vcombine.low %v1410, %v1412
        %1418 = vst [vmem:[%s176] sm:$0xff] %v1416
        %s1419 = sand.u32 %s75, 1
        %s1420 = scalar_lea.sflag [#allocation4], %s1419
        %s1421 = sand.u32 %s75, 1
        %s1422 = smul.addr %s1421, 8
        %s1423 = scalar_lea.vmem [#allocation7], %s1422
        // Predicated region
        $region37: #{ednn_apply.1} parent=27 // pred_check
          %p1424 = pneg %p85
        $region38: #{ednn_apply.1} parent=27 // pred_check_branch
          %1426 = sbr.rel (%p1424) target = $region40
        $region39: #{ednn_apply.1} parent=27 // pred_region
          %s1427 = smul.u32 2, %s20
          %s1429 = ssub.s32 128, 128
          %1430 = vsyncadd %s1420, %s1429
          %s1431 = smul.addr %s1427, 64
          %s1432 = scalar_lea.hbm %s2, %s1431
          %s1434 = sshll.u32 %s1423, 4
          %s1435 = int_to_ptr.vmem [resolvable:$true] %s1434
          %1437 = dma.vmem_to_hbm [thread:$0]  %s1435, 128, %s1432, %s1420
        $region40: #{ednn_apply.1} parent=27 // pred_fallthru
          _
      $region28: #{ednn_apply.1} parent=5 // pred_fallthru
        _
      %p1438 = scmp.le.s32.totalorder 2, %s15
      // Predicated region
      $region41: #{ednn_apply.1} parent=5 // pred_check
        %p1439 = pneg %p1438
      $region42: #{ednn_apply.1} parent=5 // pred_check_branch
        %1441 = sbr.rel (%p1439) target = $region44
      $region43: #{ednn_apply.1} parent=5 // pred_region
        %s1442 = ssub.s32 %s15, 2
        // Predicated region
        $region45: #{ednn_apply.1} parent=43 // pred_check
          %p1443 = pneg %p91
        $region46: #{ednn_apply.1} parent=43 // pred_check_branch
          %1445 = sbr.rel (%p1443) target = $region48
        $region47: #{ednn_apply.1} parent=43 // pred_region
          %s1446 = sand.u32 %s76, 1
          %s1447 = scalar_lea.sflag [#allocation4], %s1446
          %s1448 = sand.u32 %s76, 1
          %s1449 = smul.addr %s1448, 8
          %s1450 = scalar_lea.vmem [#allocation7], %s1449
          %1451 = dma.done %s1447, 128
        $region48: #{ednn_apply.1} parent=43 // pred_fallthru
          _
      $region44: #{ednn_apply.1} parent=5 // pred_fallthru
        _
    $region6: #{ednn_apply.1} parent=1 // loop_footer
      %s19 = sadd.s32 1, %s15
    $region7: #{ednn_apply.1} parent=1 // loop_footer_branch
      %14 = sbr.rel target = $region3
    $region8: #{ednn_apply.1} parent=1 // loop_exit
      _
    %1452 = vsyncpa [#allocation3], 1
    %s1453 = scalar_lea.sflag [#allocation3], 1
    %1454 = vsyncpa %s1453, 1
    %1455 = vsyncpa [#allocation6], 1
    %s1456 = scalar_lea.sflag [#allocation6], 1
    %1457 = vsyncpa %s1456, 1
    %1458 = vsyncpa [#allocation4], 1
    %s1459 = scalar_lea.sflag [#allocation4], 1
    %1460 = vsyncpa %s1459, 1

</llo_original>
